<compile_context>
chip_gen: v5e
topology: v5e:2x2
jax: 0.10.0
libtpu: 0.0.40
codegen_flags: <defaults>
</compile_context>

<pallas_src>
import jax
import jax.numpy as jnp
from jax.experimental import pallas as pl
from jax.experimental.pallas import tpu as pltpu


def _round_up(x, m):
    return ((x + m - 1) // m) * m


def _embed_kernel(x_ref, w_ref, b_ref, o_ref):
    # x_ref: (TILE_B, K) f32    w_ref: (K, N) bf16
    # b_ref: (1, N) f32         o_ref: (TILE_B, N) f32
    xb = x_ref[...].astype(w_ref.dtype)          # in-kernel cast: no HBM round trip
    acc = jnp.dot(xb, w_ref[...], preferred_element_type=jnp.float32)
    o_ref[...] = (acc + b_ref[...]).astype(o_ref.dtype)


def _choose_tiling(B, tile_b):
    """Minimal-padding row tiling; >=2 grid steps (for v7x megacore) when B allows."""
    steps = max(pl.cdiv(B, tile_b), 1)
    if B >= 16 and steps < 2:
        steps = 2                                # keep both v7x TensorCores busy
    tile = _round_up(pl.cdiv(B, steps), 8)       # sublane granularity
    b_pad = tile * steps
    return tile, b_pad, steps


def pallas_embedding(x2d, w_blk, b_blk, *, branches, d_in, d_out,
                     tile_b=4096, out_dtype=jnp.float32):
    """x2d: (B, K) f32, w_blk: (K, N) bf16, b_blk: (1, N) f32 -> (B, N) out_dtype."""
    B, K = x2d.shape
    Kw, N = w_blk.shape
    assert Kw == K

    tile, B_pad, steps = _choose_tiling(B, tile_b)
    padded = B_pad != B
    if padded:
        x2d = jnp.pad(x2d, ((0, B_pad - B), (0, 0)))

    cost = pl.CostEstimate(
        # Useful work only (per-branch 21x{d_out} matmuls), not the block-diag count.
        flops=2 * B * branches * d_in * d_out,
        transcendentals=0,
        bytes_accessed=(B_pad * K * x2d.dtype.itemsize          # x (f32)
                        + K * N * w_blk.dtype.itemsize          # W block-diag (bf16)
                        + N * b_blk.dtype.itemsize              # bias (f32)
                        + B_pad * N * jnp.dtype(out_dtype).itemsize),
    )

    out = pl.pallas_call(
        _embed_kernel,
        out_shape=jax.ShapeDtypeStruct((B_pad, N), out_dtype),
        grid_spec=pl.GridSpec(
            grid=(steps,),
            in_specs=[
                pl.BlockSpec((tile, K), lambda i: (i, 0)),   # x rows, tiled
                pl.BlockSpec((K, N), lambda i: (0, 0)),      # block-diag W, resident
                pl.BlockSpec((1, N), lambda i: (0, 0)),      # bias, resident
            ],
            out_specs=pl.BlockSpec((tile, N), lambda i: (i, 0)),
        ),
        compiler_params=pltpu.CompilerParams(
            dimension_semantics=("parallel",),
            vmem_limit_bytes=32 << 20,           # safe on v5e/v6e/v7x for 4096-row tiles
        ),
        cost_estimate=cost,
    )(x2d, w_blk, b_blk)

    return out[:B] if padded else out


class EmbeddingPallas:
    """JAX/Pallas equivalent of the PyTorch Embedding module."""

    def __init__(self, d_in, branches, d_out, key, *,
                 compute_dtype=jnp.bfloat16, out_dtype=jnp.float32):
        assert d_in == 21, "forward() hard-codes a last dim of 21"
        self.d_in = d_in
        self.branches = branches
        self.d_out = d_out
        self.compute_dtype = compute_dtype
        # out_dtype=jnp.bfloat16 halves output HBM traffic if the consumer
        # tolerates it; default f32 preserves the PyTorch module's output dtype.
        self.out_dtype = out_dtype

        k_w, k_b = jax.random.split(key)
        bound = 1.0 / jnp.sqrt(jnp.float32(d_in))
        # Stored as (d_in, d_out) == transpose of PyTorch's (d_out, d_in).
        self.weight = jax.random.uniform(
            k_w, (d_in, d_out), jnp.float32, minval=-bound, maxval=bound
        )
        self.bias = jax.random.uniform(
            k_b, (d_out,), jnp.float32, minval=-bound, maxval=bound
        )

        # Precompute lane-dense operands once:
        #   block-diagonal weight (branches*d_in, branches*d_out) in bf16,
        #   tiled bias (1, branches*d_out) kept in f32 for the epilogue add.
        self.w_blk = jnp.kron(
            jnp.eye(branches, dtype=jnp.float32), self.weight
        ).astype(compute_dtype)
        self.b_blk = jnp.tile(self.bias[None, :], (1, branches)).astype(jnp.float32)

    def __call__(self, sequences):
        # Accepts (B, branches*21) or (B, branches, 21); both flatten to the same
        # row-major (B, branches*21) layout, so the reshape is free. x stays f32
        # here; the bf16 cast happens inside the kernel (no extra HBM traffic).
        B = sequences.shape[0]
        x = sequences.reshape(B, self.branches * self.d_in).astype(jnp.float32)
        # One lane-dense matmul produces (B, branches*d_out) directly — already
        # the final PyTorch output layout, no trailing reshape needed.
        return pallas_embedding(
            x, self.w_blk, self.b_blk,
            branches=self.branches, d_in=self.d_in, d_out=self.d_out,
            out_dtype=self.out_dtype,
        )


def _reference(model, x):
    B = x.shape[0]
    x3 = x.reshape(B, model.branches, model.d_in).astype(jnp.float32)
    out = x3 @ model.weight + model.bias
    return out.reshape(B, model.branches * model.d_out)


if __name__ == "__main__":
    key = jax.random.PRNGKey(0)
    k_param, k_x, k_x2 = jax.random.split(key, 3)

    B = 2
    branches = 8
    d_in = 21
    d_out = 32

    model = EmbeddingPallas(d_in, branches, d_out, k_param)

    # Small-shape run (single grid step, padded to 8 rows internally).
    x = jax.random.normal(k_x, (B, branches * d_in), jnp.float32)
    out = jax.block_until_ready(model(x))
    ref = _reference(model, x)
    assert out.shape == (B, branches * d_out)
    assert out.dtype == jnp.float32
    assert jnp.allclose(out, ref, atol=2e-2, rtol=2e-2)  # bf16 operand tolerance

    # Larger run to exercise the multi-step grid (>=2 steps) + minimal-pad path.
    B2 = 600
    x2 = jax.random.normal(k_x2, (B2, branches * d_in), jnp.float32)
    out2 = jax.block_until_ready(model(x2))
    ref2 = _reference(model, x2)
    assert out2.shape == (B2, branches * d_out)
    assert jnp.allclose(out2, ref2, atol=2e-2, rtol=2e-2)

    print("KERNEL_OK")
</pallas_src>

<mosaic_0001>
module attributes {stable_mosaic.version = 11 : i64} {
  func.func @_embed_kernel(%arg0: i32, %arg1: memref<8x168xf32, #tpu.memory_space<vmem>>, %arg2: memref<168x256xbf16, #tpu.memory_space<vmem>>, %arg3: memref<1x256xf32, #tpu.memory_space<vmem>>, %arg4: memref<8x256xf32, #tpu.memory_space<vmem>>) attributes {dimension_semantics = [#tpu.dimension_semantics<parallel>], iteration_bounds = array<i64: 1>, scalar_prefetch = 0 : i64, scratch_operands = 0 : i64, tpu.core_type = #tpu.core_type<tc>, window_params = [{transform_indices = @transform_0, window_bounds = array<i64: 8, 168>}, {pipeline_mode = #tpu.pipeline_mode<synchronous>, transform_indices = @transform_1, window_bounds = array<i64: 168, 256>}, {pipeline_mode = #tpu.pipeline_mode<synchronous>, transform_indices = @transform_2, window_bounds = array<i64: 1, 256>}, {transform_indices = @transform_3, window_bounds = array<i64: 8, 256>}]} {
    %c0 = arith.constant 0 : index
    %c0_0 = arith.constant 0 : index
    %0 = vector.load %arg1[%c0, %c0_0] : memref<8x168xf32, #tpu.memory_space<vmem>>, vector<8x168xf32>
    %1 = arith.truncf %0 : vector<8x168xf32> to vector<8x168xbf16>
    %c0_1 = arith.constant 0 : index
    %c0_2 = arith.constant 0 : index
    %2 = vector.load %arg2[%c0_1, %c0_2] : memref<168x256xbf16, #tpu.memory_space<vmem>>, vector<168x256xbf16>
    %cst = arith.constant dense<0.000000e+00> : vector<8x256xf32>
    %3 = tpu.matmul %1, %2, %cst {dimension_numbers = #tpu.dot_dimension_numbers<[1], [0], [0], [1], [0, 0, 1, 1], [], []>} : vector<8x168xbf16>, vector<168x256xbf16>, vector<8x256xf32> -> vector<8x256xf32>
    %c0_3 = arith.constant 0 : index
    %c0_4 = arith.constant 0 : index
    %4 = vector.load %arg3[%c0_3, %c0_4] : memref<1x256xf32, #tpu.memory_space<vmem>>, vector<1x256xf32>
    %5 = vector.broadcast %4 : vector<1x256xf32> to vector<8x256xf32>
    %6 = arith.addf %3, %5 : vector<8x256xf32>
    %c0_5 = arith.constant 0 : index
    %c0_6 = arith.constant 0 : index
    %7 = vector.load %arg4[%c0_5, %c0_6] : memref<8x256xf32, #tpu.memory_space<vmem>>, vector<8x256xf32>
    tpu.vector_store %arg4[%c0_5, %c0_6], %6 {strides = array<i32>} : memref<8x256xf32, #tpu.memory_space<vmem>>, vector<8x256xf32>,
    return
  }
  func.func @transform_0(%arg0: i32) -> (i32, i32) {
    %c0_i32 = arith.constant 0 : i32
    %c0_i32_0 = arith.constant 0 : i32
    return %arg0, %c0_i32 : i32, i32
  }
  func.func @transform_1(%arg0: i32) -> (i32, i32) {
    %c0_i32 = arith.constant 0 : i32
    %c0_i32_0 = arith.constant 0 : i32
    %c0_i32_1 = arith.constant 0 : i32
    return %c0_i32, %c0_i32_0 : i32, i32
  }
  func.func @transform_2(%arg0: i32) -> (i32, i32) {
    %c0_i32 = arith.constant 0 : i32
    %c0_i32_0 = arith.constant 0 : i32
    %c0_i32_1 = arith.constant 0 : i32
    return %c0_i32, %c0_i32_0 : i32, i32
  }
  func.func @transform_3(%arg0: i32) -> (i32, i32) {
    %c0_i32 = arith.constant 0 : i32
    %c0_i32_0 = arith.constant 0 : i32
    return %arg0, %c0_i32 : i32, i32
  }
}

</mosaic_0001>

<llo_original>
// kernel: tpu_custom_call.1
$region0: #{tpu_custom_call.1}
  #allocation0 [shape = 'u32[]', space=smem, size = 0x4, offset = 0x4, fixed_abs, tag = 'smem constant byte address 0x4 - core index']
  #allocation1 [shape = 'u32[72,128]{1,0:T(1,128)}', space=vmem, size = 0x9000, scoped, tag = 'internal scratch']
  %s0 = inlined_call_operand.hbm [shape: f32[8,168], index: 0, kind: input, shape index: {}]
  %s1 = inlined_call_operand.hbm [shape: bf16[168,256], index: 1, kind: input, shape index: {}]
  %s2 = inlined_call_operand.hbm [shape: f32[1,256], index: 2, kind: input, shape index: {}]
  %s3 = inlined_call_operand.hbm [shape: f32[8,256], index: 3, kind: output, shape index: {}]
  %s4 = sld [smem:[#allocation0]]
  $region34: #{tpu_custom_call.1} parent=0
    _
  %s6 = ssub.s32 1, %s4
  %s7 = scalar_select 0, %s6, %s4
  $region1: #{tpu_custom_call.1} parent=0
    #allocation2 [shape = 'u8[8192]{0}', space=vmem, size = 0x2000, scoped, tag = 'input window, operand 0, single buffered']
    #allocation3 [shape = 's32[1]{0}', space=sflag, size = 0x4, scoped, tag = 'scoped memory for tpu_custom_call.1']
    #allocation4 [shape = 's32[1]{0}', space=sflag, size = 0x4, scoped, tag = 'scoped memory for tpu_custom_call.1']
    #allocation5 [shape = 'u8[86016]{0}', space=vmem, size = 0x15000, scoped, tag = 'input window, operand 1, single buffered']
    #allocation6 [shape = 's32[1]{0}', space=sflag, size = 0x4, scoped, tag = 'scoped memory for tpu_custom_call.1']
    #allocation7 [shape = 'u8[1024]{0}', space=vmem, size = 0x400, scoped, tag = 'input window, operand 2, single buffered']
    #allocation8 [shape = 'u8[8192]{0}', space=vmem, size = 0x2000, scoped, tag = 'output window, operand 0, single buffered']
    %8 = vsyncpa [#allocation3], 0
    %9 = vsyncpa [#allocation6], 0
    %10 = vsyncpa [#allocation4], 0
    // Predicated region
    $region2: #{tpu_custom_call.1} parent=1 // pred_check
      _
    $region3: #{tpu_custom_call.1} parent=1 // pred_check_branch
      %12 = sbr.rel (0) target = $region5
    $region4: #{tpu_custom_call.1} parent=1 // pred_region
      %14 = vsyncadd [#allocation3], 0
      %s16 = sshll.u32 %s0, 4
      %s17 = int_to_ptr.hbm [resolvable:$true] %s16
      %s18 = sshll.u32 [#allocation2], 4
      %s19 = int_to_ptr.vmem [resolvable:$true] %s18
      %21 = dma.hbm_to_vmem [thread:$0]  %s17, 256, %s19, [#allocation3]
    $region5: #{tpu_custom_call.1} parent=1 // pred_fallthru
      _
    // Predicated region
    $region6: #{tpu_custom_call.1} parent=1 // pred_check
      _
    $region7: #{tpu_custom_call.1} parent=1 // pred_check_branch
      %23 = sbr.rel (0) target = $region9
    $region8: #{tpu_custom_call.1} parent=1 // pred_region
      %25 = vsyncadd [#allocation6], 0
      %s26 = sshll.u32 %s1, 4
      %s27 = int_to_ptr.hbm [resolvable:$true] %s26
      %s28 = sshll.u32 [#allocation5], 4
      %s29 = int_to_ptr.vmem [resolvable:$true] %s28
      %34 = dma.hbm_to_vmem [thread:$0]  %s27, 2688, %s29, [#allocation6], 128, 128, 8
    $region9: #{tpu_custom_call.1} parent=1 // pred_fallthru
      _
    // Predicated region
    $region10: #{tpu_custom_call.1} parent=1 // pred_check
      _
    $region11: #{tpu_custom_call.1} parent=1 // pred_check_branch
      %36 = sbr.rel (0) target = $region13
    $region12: #{tpu_custom_call.1} parent=1 // pred_region
      %38 = vsyncadd [#allocation6], 0
      %s40 = sshll.u32 %s2, 4
      %s41 = int_to_ptr.hbm [resolvable:$true] %s40
      %s42 = sshll.u32 [#allocation7], 4
      %s43 = int_to_ptr.vmem [resolvable:$true] %s42
      %45 = dma.hbm_to_vmem [thread:$0]  %s41, 32, %s43, [#allocation6]
    $region13: #{tpu_custom_call.1} parent=1 // pred_fallthru
      _
    // Predicated region
    $region14: #{tpu_custom_call.1} parent=1 // pred_check
      _
    $region15: #{tpu_custom_call.1} parent=1 // pred_check_branch
      %47 = sbr.rel (0) target = $region17
    $region16: #{tpu_custom_call.1} parent=1 // pred_region
      %49 = dma.done [#allocation3], 256
    $region17: #{tpu_custom_call.1} parent=1 // pred_fallthru
      _
    // Predicated region
    $region18: #{tpu_custom_call.1} parent=1 // pred_check
      _
    $region19: #{tpu_custom_call.1} parent=1 // pred_check_branch
      %51 = sbr.rel (0) target = $region21
    $region20: #{tpu_custom_call.1} parent=1 // pred_region
      %53 = dma.done [#allocation6], 2688
    $region21: #{tpu_custom_call.1} parent=1 // pred_fallthru
      _
    // Predicated region
    $region22: #{tpu_custom_call.1} parent=1 // pred_check
      _
    $region23: #{tpu_custom_call.1} parent=1 // pred_check_branch
      %55 = sbr.rel (0) target = $region25
    $region24: #{tpu_custom_call.1} parent=1 // pred_region
      %57 = dma.done [#allocation6], 32
    $region25: #{tpu_custom_call.1} parent=1 // pred_fallthru
      _
    %v59 = vld [vmem:[#allocation2] sm:$0xff]
    %v60 = vld [vmem:[#allocation2 + $0x8] sm:$0xff]
    %v61 = vpack.c.bf16 %v59, %v59
    %v62 = vpack.c.bf16 %v60, %v60
    %v63 = vld [vmem:[#allocation5] sm:$0xff]
    %v64 = vld [vmem:[#allocation5 + $0x8] sm:$0xff]
    %v65 = vld [vmem:[#allocation5 + $0x10] sm:$0xff]
    %v66 = vld [vmem:[#allocation5 + $0x18] sm:$0xff]
    %v67 = vld [vmem:[#allocation5 + $0x20] sm:$0xff]
    %v68 = vld [vmem:[#allocation5 + $0x28] sm:$0xff]
    %v69 = vld [vmem:[#allocation5 + $0x30] sm:$0xff]
    %v70 = vld [vmem:[#allocation5 + $0x38] sm:$0xff]
    %v71 = vld [vmem:[#allocation5 + $0x40] sm:$0xff]
    %v72 = vld [vmem:[#allocation5 + $0x48] sm:$0xff]
    %v73 = vld [vmem:[#allocation5 + $0x50] sm:$0xff]
    %v74 = vld [vmem:[#allocation5 + $0x58] sm:$0xff]
    %v75 = vld [vmem:[#allocation5 + $0x60] sm:$0xff]
    %v76 = vld [vmem:[#allocation5 + $0x68] sm:$0xff]
    %v77 = vld [vmem:[#allocation5 + $0x70] sm:$0xff]
    %v78 = vld [vmem:[#allocation5 + $0x78] sm:$0xff]
    %v79 = vld [vmem:[#allocation5 + $0x80] sm:$0xff]
    %v80 = vld [vmem:[#allocation5 + $0x88] sm:$0xff]
    %v81 = vld [vmem:[#allocation5 + $0x90] sm:$0xff]
    %v82 = vld [vmem:[#allocation5 + $0x98] sm:$0xff]
    %v83 = vld [vmem:[#allocation5 + $0xa0] sm:$0xff]
    %v84 = vld [vmem:[#allocation7] sm:$0x3]
    %v86 = vperm.slane %v84, 0
    %v87 = vperm.slane %v84, 1
    %v111 = vunpack.c.l.b16 %v63
    %v112 = vunpack.c.h.b16 %v63
    %v113 = vunpack.c.l.b16 %v64
    %v114 = vunpack.c.h.b16 %v64
    %v115 = vunpack.c.l.b16 %v65
    %v116 = vunpack.c.h.b16 %v65
    %v117 = vunpack.c.l.b16 %v66
    %v118 = vunpack.c.h.b16 %v66
    %v119 = vunpack.c.l.b16 %v67
    %v120 = vunpack.c.h.b16 %v67
    %v121 = vunpack.c.l.b16 %v68
    %v122 = vunpack.c.h.b16 %v68
    %v123 = vunpack.c.l.b16 %v69
    %v124 = vunpack.c.h.b16 %v69
    %v125 = vunpack.c.l.b16 %v70
    %v126 = vunpack.c.h.b16 %v70
    %v127 = vunpack.c.l.b16 %v71
    %v128 = vunpack.c.h.b16 %v71
    %v129 = vunpack.c.l.b16 %v72
    %v130 = vunpack.c.h.b16 %v72
    %v131 = vunpack.c.l.b16 %v73
    %v132 = vunpack.c.h.b16 %v73
    %v133 = vunpack.c.l.b16 %v74
    %v134 = vunpack.c.h.b16 %v74
    %v135 = vunpack.c.l.b16 %v75
    %v136 = vunpack.c.h.b16 %v75
    %v137 = vunpack.c.l.b16 %v76
    %v138 = vunpack.c.h.b16 %v76
    %v139 = vunpack.c.l.b16 %v77
    %v140 = vunpack.c.h.b16 %v77
    %v141 = vunpack.c.l.b16 %v78
    %v142 = vunpack.c.h.b16 %v78
    %v143 = vunpack.c.l.b16 %v79
    %v144 = vunpack.c.h.b16 %v79
    %v145 = vunpack.c.l.b16 %v80
    %v146 = vunpack.c.h.b16 %v80
    %v147 = vunpack.c.l.b16 %v81
    %v148 = vunpack.c.h.b16 %v81
    %v149 = vunpack.c.l.b16 %v82
    %v150 = vunpack.c.h.b16 %v82
    %v151 = vunpack.c.l.b16 %v83
    %v152 = vunpack.c.h.b16 %v83
    %v153 = vpack.c.b16 %v113, %v111
    %v154 = vpack.c.b16 %v114, %v112
    %v155 = vpack.c.b16 %v117, %v115
    %v156 = vpack.c.b16 %v118, %v116
    %v157 = vpack.c.b16 %v121, %v119
    %v158 = vpack.c.b16 %v122, %v120
    %v159 = vpack.c.b16 %v125, %v123
    %v160 = vpack.c.b16 %v126, %v124
    %v161 = vpack.c.b16 %v129, %v127
    %v162 = vpack.c.b16 %v130, %v128
    %v163 = vpack.c.b16 %v133, %v131
    %v164 = vpack.c.b16 %v134, %v132
    %v165 = vpack.c.b16 %v137, %v135
    %v166 = vpack.c.b16 %v138, %v136
    %v167 = vpack.c.b16 %v141, %v139
    %v168 = vpack.c.b16 %v142, %v140
    %v169 = vpack.c.b16 %v145, %v143
    %v170 = vpack.c.b16 %v146, %v144
    %v171 = vpack.c.b16 %v149, %v147
    %v172 = vpack.c.b16 %v150, %v148
    %v173 = vpack.c.b16 %v151, %v151
    %v174 = vpack.c.b16 %v152, %v152
    %vm195 = vcmask 326656
    %v197 = vsel %vm195, %v62, 0
    %vm199 = vcmask 1043456
    %v201 = vsel %vm199, %v173, 0
    %v204 = vsel %vm199, %v174, 0
    %206 = vmatpush.bf16.msra.mxu0 %v167
    %207 = vmatpush.bf16.msra.mxu0 %v165
    %208 = vmatpush.bf16.msra.mxu0 %v163
    %209 = vmatpush.bf16.msra.mxu0 %v161
    %210 = vmatpush.bf16.msra.mxu0 %v159
    %211 = vmatpush.bf16.msra.mxu0 %v157
    %212 = vmatpush.bf16.msra.mxu0 %v155
    %213 = vmatpush.bf16.msra.mxu0 %v153
    %214 = vmatmul.bf16.gmra.mxu0 %v61
    %v215 = vpop.f32.mrf.mxu0
    %v216 = vadd.f32 %v86, %v215
    %v217 = vpop.f32.mrf.mxu0
    %218 = vdwg.mxu0
    %219 = vmatpush.bf16.msra.mxu0 0
    %220 = vmatpush.bf16.msra.mxu0 0
    %221 = vmatpush.bf16.msra.mxu0 0
    %222 = vmatpush.bf16.msra.mxu0 0
    %223 = vmatpush.bf16.msra.mxu0 0
    %224 = vmatpush.bf16.msra.mxu0 %v201
    %225 = vmatpush.bf16.msra.mxu0 %v171
    %226 = vmatpush.bf16.msra.mxu0 %v169
    %227 = vmatmul.bf16.gmra.mxu0 %v197
    %v228 = vpop.f32.mrf.mxu0
    %v229 = vadd.f32 %v216, %v228
    %v230 = vpop.f32.mrf.mxu0
    %231 = vdwg.mxu0
    %232 = vmatpush.bf16.msra.mxu0 %v168
    %233 = vmatpush.bf16.msra.mxu0 %v166
    %234 = vmatpush.bf16.msra.mxu0 %v164
    %235 = vmatpush.bf16.msra.mxu0 %v162
    %236 = vmatpush.bf16.msra.mxu0 %v160
    %237 = vmatpush.bf16.msra.mxu0 %v158
    %238 = vmatpush.bf16.msra.mxu0 %v156
    %239 = vmatpush.bf16.msra.mxu0 %v154
    %240 = vmatmul.bf16.gmra.mxu0 %v61
    %v241 = vpop.f32.mrf.mxu0
    %v242 = vadd.f32 %v87, %v241
    %v243 = vpop.f32.mrf.mxu0
    %244 = vdwg.mxu0
    %245 = vmatpush.bf16.msra.mxu0 0
    %246 = vmatpush.bf16.msra.mxu0 0
    %247 = vmatpush.bf16.msra.mxu0 0
    %248 = vmatpush.bf16.msra.mxu0 0
    %249 = vmatpush.bf16.msra.mxu0 0
    %250 = vmatpush.bf16.msra.mxu0 %v204
    %251 = vmatpush.bf16.msra.mxu0 %v172
    %252 = vmatpush.bf16.msra.mxu0 %v170
    %253 = vmatmul.bf16.gmra.mxu0 %v197
    %v254 = vpop.f32.mrf.mxu0
    %v255 = vadd.f32 %v242, %v254
    %v256 = vpop.f32.mrf.mxu0
    %257 = vdwg.mxu0
    %258 = vst [vmem:[#allocation8] sm:$0xff] %v229
    %259 = vst [vmem:[#allocation8 + $0x8] sm:$0xff] %v255
    // Predicated region
    $region26: #{tpu_custom_call.1} parent=1 // pred_check
      _
    $region27: #{tpu_custom_call.1} parent=1 // pred_check_branch
      %261 = sbr.rel (0) target = $region29
    $region28: #{tpu_custom_call.1} parent=1 // pred_region
      %263 = vsyncadd [#allocation4], 0
      %s265 = sshll.u32 [#allocation8], 4
      %s266 = int_to_ptr.vmem [resolvable:$true] %s265
      %s267 = sshll.u32 %s3, 4
      %s268 = int_to_ptr.hbm [resolvable:$true] %s267
      %270 = dma.vmem_to_hbm [thread:$0]  %s266, 256, %s268, [#allocation4]
    $region29: #{tpu_custom_call.1} parent=1 // pred_fallthru
      _
    // Predicated region
    $region30: #{tpu_custom_call.1} parent=1 // pred_check
      _
    $region31: #{tpu_custom_call.1} parent=1 // pred_check_branch
      %272 = sbr.rel (0) target = $region33
    $region32: #{tpu_custom_call.1} parent=1 // pred_region
      %274 = dma.done [#allocation4], 256
    $region33: #{tpu_custom_call.1} parent=1 // pred_fallthru
      _
    %275 = vsyncpa [#allocation3], 1
    %276 = vsyncpa [#allocation6], 1
    %277 = vsyncpa [#allocation4], 1

</llo_original>
